<compile_context>
chip_gen: v7x
topology: tpu7x:2x2x1
jax: 0.10.0
libtpu: 0.0.40
codegen_flags: <defaults>
</compile_context>

<pallas_src>
import math
from functools import partial

import jax
import jax.numpy as jnp
from jax import lax
from jax.experimental import pallas as pl
from jax.experimental.pallas import tpu as pltpu

# ----- module hyper-parameters (from the PyTorch source) ---------------------
BLOCK_SIZE = 64                    # max sequence length for the causal mask
EMB_DIM = 64
NUM_HEADS = 4
HEAD_SIZE = EMB_DIM // NUM_HEADS   # 16
DROPOUT = 0.0                      # dropout == 0.0 -> identity (no-op)


def _mha_kernel(x_ref, wqkv_ref, wp_ref, bp_ref, o_ref,
                *, num_heads, head_size, seq_len):
    """Fused QKV proj + causal MHA + output proj for TB batch rows per step.

    x_ref    : (TB*T, C)       bf16 flattened activation slab for TB batch rows
    wqkv_ref : (C, 3*H*hs)     bf16 fused QKV weights (1/sqrt(hs) folded into Wq)
    wp_ref   : (H*hs, C_out)   bf16 output projection weight
    bp_ref   : (1, C_out)      f32 output projection bias
    o_ref    : (TB*T, C_out)   flattened output slab (input dtype)
    """
    rows = x_ref.shape[0]                      # TB * T
    tb = rows // seq_len
    hs = head_size
    Hs = num_heads * head_size
    mm_dtype = x_ref.dtype                     # bf16 (MXU-native) by default

    x = x_ref[...]

    # One fused QKV projection: (rows, C) @ (C, 3*H*hs), f32 accumulation.
    qkv = jnp.dot(x, wqkv_ref[...], preferred_element_type=jnp.float32)
    qkv = qkv.astype(mm_dtype).reshape(tb, seq_len, 3 * Hs)

    # Causal mask built once per grid step, shared across heads & batch rows.
    row = lax.broadcasted_iota(jnp.int32, (seq_len, seq_len), 0)
    col = lax.broadcasted_iota(jnp.int32, (seq_len, seq_len), 1)
    causal = (col <= row)[None, :, :]          # (1, T, T)
    neg = jnp.float32(-1e30)                   # finite fill: NaN-safe if padded

    # TODO(synk): hs=16 lane-offset slices below may lower to per-head lane
    # selects; if bundle dumps show XLU relayouts dominating, pre-permute the
    # wqkv columns / batch the head contraction in one dot_general instead.
    ctx_heads = []
    for h in range(num_heads):                 # static unrolled (4 heads)
        lo = h * hs
        qh = qkv[..., lo:lo + hs]              # (TB, T, hs) -- scale pre-folded
        kh = qkv[..., Hs + lo:Hs + lo + hs]
        vh = qkv[..., 2 * Hs + lo:2 * Hs + lo + hs]

        # Scores via contracting-dim einsum (no explicit kh.T -> no XLU xpose).
        s = jnp.einsum('bqd,bkd->bqk', qh, kh,
                       preferred_element_type=jnp.float32)       # f32
        s = jnp.where(causal, s, neg)

        # Open-coded softmax, all in f32 (v5e VPU/EUP have no bf16 path):
        # row max (XLU), subtract, exp (EUP), row sum, approx reciprocal (EUP).
        m = jnp.max(s, axis=-1, keepdims=True)
        e = jnp.exp(s - m)
        denom = jnp.sum(e, axis=-1, keepdims=True)
        p = e * pl.reciprocal(denom, approx=True)                # dropout==0

        ctx = jnp.einsum('bqk,bkd->bqd', p.astype(mm_dtype), vh,
                         preferred_element_type=jnp.float32)     # (TB, T, hs)
        ctx_heads.append(ctx.astype(mm_dtype))

    # Assemble all heads into one (rows, H*hs) slab -> single K=64 projection.
    ctx_all = jnp.concatenate(ctx_heads, axis=-1).reshape(rows, Hs)
    out = jnp.dot(ctx_all, wp_ref[...], preferred_element_type=jnp.float32)
    out = out + bp_ref[...].astype(jnp.float32)
    o_ref[...] = out.astype(o_ref.dtype)       # dropout==0 -> identity


def _pick_batch_block(B, T, target_rows=4096, min_grid=2):
    """Batch rows per grid step: ~target_rows matmul rows, grid >= min_grid
    when possible (v7x megacore), rows sublane-aligned when grid > 1."""
    tb = max(1, min(B, target_rows // max(T, 1)))
    if B >= min_grid:
        tb = min(tb, max(1, B // min_grid))    # keep >=2 grid steps for 2 TCs
    tb = max(tb, 1)
    while B % tb:
        tb -= 1
    # Block (tb*T, C): when grid > 1 the sublane dim must be a multiple of 8;
    # fall back to a single full-array block if not.
    if B // tb > 1 and (tb * T) % 8 != 0:
        tb = B
    return tb


def multi_headed_attention(x, wq, wk, wv, wp, bp,
                           *, num_heads=NUM_HEADS, head_size=HEAD_SIZE,
                           batch_block=None, matmul_dtype=jnp.bfloat16):
    """x: (B, T, C);  wq/wk/wv: (C, H*hs);  wp: (H*hs, C_out);  bp: (1, C_out)."""
    B, T, C = x.shape
    C_out = wp.shape[1]

    tb = batch_block if batch_block is not None else _pick_batch_block(B, T)
    assert B % tb == 0, (B, tb)
    rows = tb * T                               # matmul M per grid step

    # Fuse the three projection weights in the wrapper (one kernel matmul) and
    # fold the 1/sqrt(head_size) attention scale into the Wq columns.
    inv_sqrt = 1.0 / math.sqrt(float(head_size))
    wqkv = jnp.concatenate([wq * inv_sqrt, wk, wv], axis=1)      # (C, 3*H*hs)

    # bf16 MXU inputs; f32 accumulation happens inside the kernel.
    wqkv = wqkv.astype(matmul_dtype)
    wp_c = wp.astype(matmul_dtype)
    bp_c = bp.astype(jnp.float32)
    x2 = x.reshape(B * T, C).astype(matmul_dtype)   # lane-dense activation slab

    kernel = partial(_mha_kernel, num_heads=num_heads,
                     head_size=head_size, seq_len=T)
    out2 = pl.pallas_call(
        kernel,
        out_shape=jax.ShapeDtypeStruct((B * T, C_out), x.dtype),
        grid_spec=pltpu.PrefetchScalarGridSpec(
            num_scalar_prefetch=0,
            grid=(B // tb,),
            in_specs=[
                pl.BlockSpec((rows, C), lambda i: (i, 0)),
                pl.BlockSpec(wqkv.shape, lambda i: (0, 0)),
                pl.BlockSpec(wp_c.shape, lambda i: (0, 0)),
                pl.BlockSpec(bp_c.shape, lambda i: (0, 0)),
            ],
            out_specs=pl.BlockSpec((rows, C_out), lambda i: (i, 0)),
        ),
        compiler_params=pltpu.CompilerParams(
            dimension_semantics=("parallel",)),   # megacore split over batch blocks
    )(x2, wqkv, wp_c, bp_c)
    return out2.reshape(B, T, C_out)


def _reference(x, wq, wk, wv, wp, bp, *, num_heads=NUM_HEADS, head_size=HEAD_SIZE):
    """Pure-JAX f32 reference mirroring the PyTorch forward, for verification."""
    B, T, C = x.shape
    q = x @ wq
    k = x @ wk
    v = x @ wv
    q = q.reshape(B, T, num_heads, head_size).transpose(0, 2, 1, 3)
    k = k.reshape(B, T, num_heads, head_size).transpose(0, 2, 1, 3)
    v = v.reshape(B, T, num_heads, head_size).transpose(0, 2, 1, 3)
    s = jnp.einsum('bhqd,bhkd->bhqk', q, k) / math.sqrt(head_size)
    mask = jnp.tril(jnp.ones((T, T), bool))
    s = jnp.where(mask, s, -jnp.inf)
    p = jax.nn.softmax(s, axis=-1)
    ctx = jnp.einsum('bhqk,bhkd->bhqd', p, v)
    ctx = ctx.transpose(0, 2, 1, 3).reshape(B, T, num_heads * head_size)
    return ctx @ wp + bp


if __name__ == "__main__":
    key = jax.random.PRNGKey(0)
    B, T = 2, 8        # T <= block_size (64)
    C = EMB_DIM

    k_x, k_q, k_k, k_v, k_p, k_b = jax.random.split(key, 6)
    x = jax.random.normal(k_x, (B, T, C), dtype=jnp.float32)

    # Per-head nn.Linear(emb_dim, head_size, bias=False) weights, concatenated
    # along the output axis (PyTorch weight is (out,in); we store the transpose
    # so the kernel computes x @ W directly).
    scale = 0.02
    wq = scale * jax.random.normal(k_q, (C, NUM_HEADS * HEAD_SIZE), dtype=jnp.float32)
    wk = scale * jax.random.normal(k_k, (C, NUM_HEADS * HEAD_SIZE), dtype=jnp.float32)
    wv = scale * jax.random.normal(k_v, (C, NUM_HEADS * HEAD_SIZE), dtype=jnp.float32)
    # proj = nn.Linear(head_size*4, head_size*4) with bias.
    wp = scale * jax.random.normal(k_p, (NUM_HEADS * HEAD_SIZE, NUM_HEADS * HEAD_SIZE),
                                   dtype=jnp.float32)
    bp = scale * jax.random.normal(k_b, (1, NUM_HEADS * HEAD_SIZE), dtype=jnp.float32)

    out = multi_headed_attention(x, wq, wk, wv, wp, bp)
    out = jax.block_until_ready(out)

    ref = _reference(x, wq, wk, wv, wp, bp)
    assert out.shape == (B, T, NUM_HEADS * HEAD_SIZE), out.shape
    # bf16 matmul inputs + approx-reciprocal softmax vs. f32 reference.
    assert jnp.allclose(out, ref, atol=2e-2, rtol=2e-2), \
        float(jnp.max(jnp.abs(out - ref)))

    print("KERNEL_OK")
</pallas_src>

<mosaic_0001>
module attributes {stable_mosaic.version = 11 : i64} {
  func.func @_mha_kernel(%arg0: i32, %arg1: memref<8x64xbf16, #tpu.memory_space<vmem>>, %arg2: memref<64x192xbf16, #tpu.memory_space<vmem>>, %arg3: memref<64x64xbf16, #tpu.memory_space<vmem>>, %arg4: memref<1x64xf32, #tpu.memory_space<vmem>>, %arg5: memref<8x64xf32, #tpu.memory_space<vmem>>) attributes {dimension_semantics = [#tpu.dimension_semantics<parallel>], iteration_bounds = array<i64: 2>, scalar_prefetch = 0 : i64, scratch_operands = 0 : i64, tpu.core_type = #tpu.core_type<tc>, window_params = [{transform_indices = @transform_0, window_bounds = array<i64: 8, 64>}, {pipeline_mode = #tpu.pipeline_mode<synchronous>, transform_indices = @transform_1, window_bounds = array<i64: 64, 192>}, {pipeline_mode = #tpu.pipeline_mode<synchronous>, transform_indices = @transform_2, window_bounds = array<i64: 64, 64>}, {pipeline_mode = #tpu.pipeline_mode<synchronous>, transform_indices = @transform_3, window_bounds = array<i64: 1, 64>}, {transform_indices = @transform_4, window_bounds = array<i64: 8, 64>}]} {
    %c0 = arith.constant 0 : index
    %c0_0 = arith.constant 0 : index
    %0 = vector.load %arg1[%c0, %c0_0] : memref<8x64xbf16, #tpu.memory_space<vmem>>, vector<8x64xbf16>
    %c0_1 = arith.constant 0 : index
    %c0_2 = arith.constant 0 : index
    %1 = vector.load %arg2[%c0_1, %c0_2] : memref<64x192xbf16, #tpu.memory_space<vmem>>, vector<64x192xbf16>
    %cst = arith.constant dense<0.000000e+00> : vector<8x192xf32>
    %2 = tpu.matmul %0, %1, %cst {dimension_numbers = #tpu.dot_dimension_numbers<[1], [0], [0], [1], [0, 0, 1, 1], [], []>} : vector<8x64xbf16>, vector<64x192xbf16>, vector<8x192xf32> -> vector<8x192xf32>
    %3 = arith.truncf %2 : vector<8x192xf32> to vector<8x192xbf16>
    %4 = vector.shape_cast %3 : vector<8x192xbf16> to vector<1x8x192xbf16>
    %5 = tpu.iota {dimensions = array<i32: 0>} : vector<8x8xi32>
    %6 = tpu.iota {dimensions = array<i32: 1>} : vector<8x8xi32>
    %7 = arith.cmpi sle, %6, %5 : vector<8x8xi32>
    %8 = vector.shape_cast %7 : vector<8x8xi1> to vector<1x8x8xi1>
    %9 = vector.extract_strided_slice %4 {offsets = [0, 0, 0], sizes = [1, 8, 16], strides = [1, 1, 1]} : vector<1x8x192xbf16> to vector<1x8x16xbf16>
    %10 = vector.extract_strided_slice %4 {offsets = [0, 0, 64], sizes = [1, 8, 16], strides = [1, 1, 1]} : vector<1x8x192xbf16> to vector<1x8x16xbf16>
    %11 = vector.extract_strided_slice %4 {offsets = [0, 0, 128], sizes = [1, 8, 16], strides = [1, 1, 1]} : vector<1x8x192xbf16> to vector<1x8x16xbf16>
    "tpu.trace_start"() <{level = 10 : i32, message = "bqd,bkd->bqk"}> : () -> ()
    %cst_3 = arith.constant dense<0.000000e+00> : vector<1x8x8xf32>
    %12 = tpu.matmul %9, %10, %cst_3 {dimension_numbers = #tpu.dot_dimension_numbers<[2], [2], [1], [1], [0, 0, 0, 1, 1, 1], [0], [0]>} : vector<1x8x16xbf16>, vector<1x8x16xbf16>, vector<1x8x8xf32> -> vector<1x8x8xf32>
    %cst_4 = arith.constant -1.000000e+30 : f32
    "tpu.trace_stop"() : () -> ()
    %13 = vector.broadcast %cst_4 : f32 to vector<1x8x8xf32>
    %14 = arith.select %8, %12, %13 : vector<1x8x8xi1>, vector<1x8x8xf32>
    %cst_5 = arith.constant dense<0xFF800000> : vector<1x8xf32>
    %15 = vector.multi_reduction <maximumf>, %14, %cst_5 [2] : vector<1x8x8xf32> to vector<1x8xf32>
    %16 = vector.shape_cast %15 : vector<1x8xf32> to vector<1x8x1xf32>
    %17 = vector.broadcast %16 : vector<1x8x1xf32> to vector<1x8x8xf32>
    %18 = arith.subf %14, %17 : vector<1x8x8xf32>
    %19 = math.exp %18 : vector<1x8x8xf32>
    %cst_6 = arith.constant dense<0.000000e+00> : vector<1x8xf32>
    %20 = vector.multi_reduction <add>, %19, %cst_6 [2] : vector<1x8x8xf32> to vector<1x8xf32>
    %21 = vector.shape_cast %20 : vector<1x8xf32> to vector<1x8x1xf32>
    %22 = tpu.reciprocal %21 {approx = true} : vector<1x8x1xf32> -> vector<1x8x1xf32>
    %23 = vector.broadcast %22 : vector<1x8x1xf32> to vector<1x8x8xf32>
    %24 = arith.mulf %19, %23 : vector<1x8x8xf32>
    %25 = arith.truncf %24 : vector<1x8x8xf32> to vector<1x8x8xbf16>
    "tpu.trace_start"() <{level = 10 : i32, message = "bqk,bkd->bqd"}> : () -> ()
    %cst_7 = arith.constant dense<0.000000e+00> : vector<1x8x16xf32>
    %26 = tpu.matmul %25, %11, %cst_7 {dimension_numbers = #tpu.dot_dimension_numbers<[2], [1], [1], [2], [0, 0, 0, 1, 1, 2], [0], [0]>} : vector<1x8x8xbf16>, vector<1x8x16xbf16>, vector<1x8x16xf32> -> vector<1x8x16xf32>
    "tpu.trace_stop"() : () -> ()
    %27 = arith.truncf %26 : vector<1x8x16xf32> to vector<1x8x16xbf16>
    %28 = vector.extract_strided_slice %4 {offsets = [0, 0, 16], sizes = [1, 8, 16], strides = [1, 1, 1]} : vector<1x8x192xbf16> to vector<1x8x16xbf16>
    %29 = vector.extract_strided_slice %4 {offsets = [0, 0, 80], sizes = [1, 8, 16], strides = [1, 1, 1]} : vector<1x8x192xbf16> to vector<1x8x16xbf16>
    %30 = vector.extract_strided_slice %4 {offsets = [0, 0, 144], sizes = [1, 8, 16], strides = [1, 1, 1]} : vector<1x8x192xbf16> to vector<1x8x16xbf16>
    "tpu.trace_start"() <{level = 10 : i32, message = "bqd,bkd->bqk"}> : () -> ()
    %cst_8 = arith.constant dense<0.000000e+00> : vector<1x8x8xf32>
    %31 = tpu.matmul %28, %29, %cst_8 {dimension_numbers = #tpu.dot_dimension_numbers<[2], [2], [1], [1], [0, 0, 0, 1, 1, 1], [0], [0]>} : vector<1x8x16xbf16>, vector<1x8x16xbf16>, vector<1x8x8xf32> -> vector<1x8x8xf32>
    %cst_9 = arith.constant -1.000000e+30 : f32
    "tpu.trace_stop"() : () -> ()
    %32 = vector.broadcast %cst_9 : f32 to vector<1x8x8xf32>
    %33 = arith.select %8, %31, %32 : vector<1x8x8xi1>, vector<1x8x8xf32>
    %cst_10 = arith.constant dense<0xFF800000> : vector<1x8xf32>
    %34 = vector.multi_reduction <maximumf>, %33, %cst_10 [2] : vector<1x8x8xf32> to vector<1x8xf32>
    %35 = vector.shape_cast %34 : vector<1x8xf32> to vector<1x8x1xf32>
    %36 = vector.broadcast %35 : vector<1x8x1xf32> to vector<1x8x8xf32>
    %37 = arith.subf %33, %36 : vector<1x8x8xf32>
    %38 = math.exp %37 : vector<1x8x8xf32>
    %cst_11 = arith.constant dense<0.000000e+00> : vector<1x8xf32>
    %39 = vector.multi_reduction <add>, %38, %cst_11 [2] : vector<1x8x8xf32> to vector<1x8xf32>
    %40 = vector.shape_cast %39 : vector<1x8xf32> to vector<1x8x1xf32>
    %41 = tpu.reciprocal %40 {approx = true} : vector<1x8x1xf32> -> vector<1x8x1xf32>
    %42 = vector.broadcast %41 : vector<1x8x1xf32> to vector<1x8x8xf32>
    %43 = arith.mulf %38, %42 : vector<1x8x8xf32>
    %44 = arith.truncf %43 : vector<1x8x8xf32> to vector<1x8x8xbf16>
    "tpu.trace_start"() <{level = 10 : i32, message = "bqk,bkd->bqd"}> : () -> ()
    %cst_12 = arith.constant dense<0.000000e+00> : vector<1x8x16xf32>
    %45 = tpu.matmul %44, %30, %cst_12 {dimension_numbers = #tpu.dot_dimension_numbers<[2], [1], [1], [2], [0, 0, 0, 1, 1, 2], [0], [0]>} : vector<1x8x8xbf16>, vector<1x8x16xbf16>, vector<1x8x16xf32> -> vector<1x8x16xf32>
    "tpu.trace_stop"() : () -> ()
    %46 = arith.truncf %45 : vector<1x8x16xf32> to vector<1x8x16xbf16>
    %47 = vector.extract_strided_slice %4 {offsets = [0, 0, 32], sizes = [1, 8, 16], strides = [1, 1, 1]} : vector<1x8x192xbf16> to vector<1x8x16xbf16>
    %48 = vector.extract_strided_slice %4 {offsets = [0, 0, 96], sizes = [1, 8, 16], strides = [1, 1, 1]} : vector<1x8x192xbf16> to vector<1x8x16xbf16>
    %49 = vector.extract_strided_slice %4 {offsets = [0, 0, 160], sizes = [1, 8, 16], strides = [1, 1, 1]} : vector<1x8x192xbf16> to vector<1x8x16xbf16>
    "tpu.trace_start"() <{level = 10 : i32, message = "bqd,bkd->bqk"}> : () -> ()
    %cst_13 = arith.constant dense<0.000000e+00> : vector<1x8x8xf32>
    %50 = tpu.matmul %47, %48, %cst_13 {dimension_numbers = #tpu.dot_dimension_numbers<[2], [2], [1], [1], [0, 0, 0, 1, 1, 1], [0], [0]>} : vector<1x8x16xbf16>, vector<1x8x16xbf16>, vector<1x8x8xf32> -> vector<1x8x8xf32>
    %cst_14 = arith.constant -1.000000e+30 : f32
    "tpu.trace_stop"() : () -> ()
    %51 = vector.broadcast %cst_14 : f32 to vector<1x8x8xf32>
    %52 = arith.select %8, %50, %51 : vector<1x8x8xi1>, vector<1x8x8xf32>
    %cst_15 = arith.constant dense<0xFF800000> : vector<1x8xf32>
    %53 = vector.multi_reduction <maximumf>, %52, %cst_15 [2] : vector<1x8x8xf32> to vector<1x8xf32>
    %54 = vector.shape_cast %53 : vector<1x8xf32> to vector<1x8x1xf32>
    %55 = vector.broadcast %54 : vector<1x8x1xf32> to vector<1x8x8xf32>
    %56 = arith.subf %52, %55 : vector<1x8x8xf32>
    %57 = math.exp %56 : vector<1x8x8xf32>
    %cst_16 = arith.constant dense<0.000000e+00> : vector<1x8xf32>
    %58 = vector.multi_reduction <add>, %57, %cst_16 [2] : vector<1x8x8xf32> to vector<1x8xf32>
    %59 = vector.shape_cast %58 : vector<1x8xf32> to vector<1x8x1xf32>
    %60 = tpu.reciprocal %59 {approx = true} : vector<1x8x1xf32> -> vector<1x8x1xf32>
    %61 = vector.broadcast %60 : vector<1x8x1xf32> to vector<1x8x8xf32>
    %62 = arith.mulf %57, %61 : vector<1x8x8xf32>
    %63 = arith.truncf %62 : vector<1x8x8xf32> to vector<1x8x8xbf16>
    "tpu.trace_start"() <{level = 10 : i32, message = "bqk,bkd->bqd"}> : () -> ()
    %cst_17 = arith.constant dense<0.000000e+00> : vector<1x8x16xf32>
    %64 = tpu.matmul %63, %49, %cst_17 {dimension_numbers = #tpu.dot_dimension_numbers<[2], [1], [1], [2], [0, 0, 0, 1, 1, 2], [0], [0]>} : vector<1x8x8xbf16>, vector<1x8x16xbf16>, vector<1x8x16xf32> -> vector<1x8x16xf32>
    "tpu.trace_stop"() : () -> ()
    %65 = arith.truncf %64 : vector<1x8x16xf32> to vector<1x8x16xbf16>
    %66 = vector.extract_strided_slice %4 {offsets = [0, 0, 48], sizes = [1, 8, 16], strides = [1, 1, 1]} : vector<1x8x192xbf16> to vector<1x8x16xbf16>
    %67 = vector.extract_strided_slice %4 {offsets = [0, 0, 112], sizes = [1, 8, 16], strides = [1, 1, 1]} : vector<1x8x192xbf16> to vector<1x8x16xbf16>
    %68 = vector.extract_strided_slice %4 {offsets = [0, 0, 176], sizes = [1, 8, 16], strides = [1, 1, 1]} : vector<1x8x192xbf16> to vector<1x8x16xbf16>
    "tpu.trace_start"() <{level = 10 : i32, message = "bqd,bkd->bqk"}> : () -> ()
    %cst_18 = arith.constant dense<0.000000e+00> : vector<1x8x8xf32>
    %69 = tpu.matmul %66, %67, %cst_18 {dimension_numbers = #tpu.dot_dimension_numbers<[2], [2], [1], [1], [0, 0, 0, 1, 1, 1], [0], [0]>} : vector<1x8x16xbf16>, vector<1x8x16xbf16>, vector<1x8x8xf32> -> vector<1x8x8xf32>
    %cst_19 = arith.constant -1.000000e+30 : f32
    "tpu.trace_stop"() : () -> ()
    %70 = vector.broadcast %cst_19 : f32 to vector<1x8x8xf32>
    %71 = arith.select %8, %69, %70 : vector<1x8x8xi1>, vector<1x8x8xf32>
    %cst_20 = arith.constant dense<0xFF800000> : vector<1x8xf32>
    %72 = vector.multi_reduction <maximumf>, %71, %cst_20 [2] : vector<1x8x8xf32> to vector<1x8xf32>
    %73 = vector.shape_cast %72 : vector<1x8xf32> to vector<1x8x1xf32>
    %74 = vector.broadcast %73 : vector<1x8x1xf32> to vector<1x8x8xf32>
    %75 = arith.subf %71, %74 : vector<1x8x8xf32>
    %76 = math.exp %75 : vector<1x8x8xf32>
    %cst_21 = arith.constant dense<0.000000e+00> : vector<1x8xf32>
    %77 = vector.multi_reduction <add>, %76, %cst_21 [2] : vector<1x8x8xf32> to vector<1x8xf32>
    %78 = vector.shape_cast %77 : vector<1x8xf32> to vector<1x8x1xf32>
    %79 = tpu.reciprocal %78 {approx = true} : vector<1x8x1xf32> -> vector<1x8x1xf32>
    %80 = vector.broadcast %79 : vector<1x8x1xf32> to vector<1x8x8xf32>
    %81 = arith.mulf %76, %80 : vector<1x8x8xf32>
    %82 = arith.truncf %81 : vector<1x8x8xf32> to vector<1x8x8xbf16>
    "tpu.trace_start"() <{level = 10 : i32, message = "bqk,bkd->bqd"}> : () -> ()
    %cst_22 = arith.constant dense<0.000000e+00> : vector<1x8x16xf32>
    %83 = tpu.matmul %82, %68, %cst_22 {dimension_numbers = #tpu.dot_dimension_numbers<[2], [1], [1], [2], [0, 0, 0, 1, 1, 2], [0], [0]>} : vector<1x8x8xbf16>, vector<1x8x16xbf16>, vector<1x8x16xf32> -> vector<1x8x16xf32>
    "tpu.trace_stop"() : () -> ()
    %84 = arith.truncf %83 : vector<1x8x16xf32> to vector<1x8x16xbf16>
    %85 = tpu.concatenate %27, %46, %65, %84 in 2 : vector<1x8x16xbf16>, vector<1x8x16xbf16>, vector<1x8x16xbf16>, vector<1x8x16xbf16> -> vector<1x8x64xbf16>
    %86 = vector.shape_cast %85 : vector<1x8x64xbf16> to vector<8x64xbf16>
    %c0_23 = arith.constant 0 : index
    %c0_24 = arith.constant 0 : index
    %87 = vector.load %arg3[%c0_23, %c0_24] : memref<64x64xbf16, #tpu.memory_space<vmem>>, vector<64x64xbf16>
    %cst_25 = arith.constant dense<0.000000e+00> : vector<8x64xf32>
    %88 = tpu.matmul %86, %87, %cst_25 {dimension_numbers = #tpu.dot_dimension_numbers<[1], [0], [0], [1], [0, 0, 1, 1], [], []>} : vector<8x64xbf16>, vector<64x64xbf16>, vector<8x64xf32> -> vector<8x64xf32>
    %c0_26 = arith.constant 0 : index
    %c0_27 = arith.constant 0 : index
    %89 = vector.load %arg4[%c0_26, %c0_27] : memref<1x64xf32, #tpu.memory_space<vmem>>, vector<1x64xf32>
    %90 = vector.broadcast %89 : vector<1x64xf32> to vector<8x64xf32>
    %91 = arith.addf %88, %90 : vector<8x64xf32>
    %c0_28 = arith.constant 0 : index
    %c0_29 = arith.constant 0 : index
    %92 = vector.load %arg5[%c0_28, %c0_29] : memref<8x64xf32, #tpu.memory_space<vmem>>, vector<8x64xf32>
    tpu.vector_store %arg5[%c0_28, %c0_29], %91 {strides = array<i32>} : memref<8x64xf32, #tpu.memory_space<vmem>>, vector<8x64xf32>,
    return
  }
  func.func @transform_0(%arg0: i32) -> (i32, i32) {
    %c0_i32 = arith.constant 0 : i32
    %c0_i32_0 = arith.constant 0 : i32
    return %arg0, %c0_i32 : i32, i32
  }
  func.func @transform_1(%arg0: i32) -> (i32, i32) {
    %c0_i32 = arith.constant 0 : i32
    %c0_i32_0 = arith.constant 0 : i32
    %c0_i32_1 = arith.constant 0 : i32
    return %c0_i32, %c0_i32_0 : i32, i32
  }
  func.func @transform_2(%arg0: i32) -> (i32, i32) {
    %c0_i32 = arith.constant 0 : i32
    %c0_i32_0 = arith.constant 0 : i32
    %c0_i32_1 = arith.constant 0 : i32
    return %c0_i32, %c0_i32_0 : i32, i32
  }
  func.func @transform_3(%arg0: i32) -> (i32, i32) {
    %c0_i32 = arith.constant 0 : i32
    %c0_i32_0 = arith.constant 0 : i32
    %c0_i32_1 = arith.constant 0 : i32
    return %c0_i32, %c0_i32_0 : i32, i32
  }
  func.func @transform_4(%arg0: i32) -> (i32, i32) {
    %c0_i32 = arith.constant 0 : i32
    %c0_i32_0 = arith.constant 0 : i32
    return %arg0, %c0_i32 : i32, i32
  }
}

</mosaic_0001>

<llo_original>
// kernel: tpu_custom_call.1
$region0: #{tpu_custom_call.1}
  #allocation0 [shape = 'u32[]', space=smem, size = 0x4, offset = 0x4, fixed_abs, tag = 'smem constant byte address 0x4 - core index']
  #allocation1 [shape = 'u32[144,128]{1,0:T(1,128)}', space=vmem, size = 0x12000, scoped, tag = 'internal scratch']
  %s0 = inlined_call_operand.hbm [shape: bf16[16,64], index: 0, kind: input, shape index: {}]
  %s1 = inlined_call_operand.hbm [shape: bf16[64,192], index: 1, kind: input, shape index: {}]
  %s2 = inlined_call_operand.hbm [shape: bf16[64,64], index: 2, kind: input, shape index: {}]
  %s3 = inlined_call_operand.vmem [shape: f32[1,64], index: 3, kind: input, shape index: {}]
  %s4 = inlined_call_operand.hbm [shape: f32[16,64], index: 4, kind: output, shape index: {}]
  %s5 = sld [smem:[#allocation0]]
  $region61: #{tpu_custom_call.1} parent=0
    _
  %s7 = ssub.s32 1, %s5
  %s8 = scalar_select 0, %s7, %s5
  $region1: #{tpu_custom_call.1} parent=0
    #allocation2 [shape = 'u8[4096]{0}', space=vmem, size = 0x1000, scoped, tag = 'input window, operand 0']
    #allocation3 [shape = 's32[2]{0}', space=sflag, size = 0x8, scoped, tag = 'scoped memory for tpu_custom_call.1']
    #allocation4 [shape = 's32[2]{0}', space=sflag, size = 0x8, scoped, tag = 'scoped memory for tpu_custom_call.1']
    #allocation5 [shape = 'u8[32768]{0}', space=vmem, size = 0x8000, scoped, tag = 'input window, operand 1, single buffered']
    #allocation6 [shape = 's32[1]{0}', space=sflag, size = 0x4, scoped, tag = 'scoped memory for tpu_custom_call.1']
    #allocation7 [shape = 'u8[16384]{0}', space=vmem, size = 0x4000, scoped, tag = 'input window, operand 2, single buffered']
    #allocation8 [shape = 'u8[8192]{0}', space=vmem, size = 0x2000, scoped, tag = 'output window, operand 0']
    %9 = vsyncpa [#allocation3], 0
    %s10 = scalar_lea.sflag [#allocation3], 1
    %11 = vsyncpa %s10, 0
    %12 = vsyncpa [#allocation6], 0
    %13 = vsyncpa [#allocation4], 0
    %s14 = scalar_lea.sflag [#allocation4], 1
    %15 = vsyncpa %s14, 0
    loop: start=0, step=1, limit=4
    $region2: #{tpu_custom_call.1} parent=1 // loop_pre_header
      _
    $region3: #{tpu_custom_call.1} parent=1 // loop_header
      %s17 = sphi 0, %s21
      %p18 = scmp.ge.s32.totalorder %s17, 4
      %s27 = sphi 0, %s29
      %s30 = sphi 0, %s27
      %s31 = sphi 0, %s30
      %s47 = sphi 0, %s31
      %s51 = sphi 0, %s51
      %s53 = sphi 0, %s51
      %s54 = sphi 0, %s53
      %s68 = sphi 0, %s54
      %s72 = sphi 0, %s72
      %s74 = sphi 0, %s72
      %s75 = sphi 0, %s74
      %s89 = sphi 0, %s75
      %s93 = sphi 0, %s93
      %s95 = sphi 0, %s93
      %s96 = sphi 0, %s95
      %s110 = sphi 0, %s96
      %s116 = sphi 0, %s118
      %s119 = sphi 0, %s116
      %s120 = sphi 0, %s119
      %s136 = sphi 0, %s120
    $region4: #{tpu_custom_call.1} parent=1 // loop_header_branch
      %20 = sbr.rel (%p18) target = $region8
    $region5: #{tpu_custom_call.1} parent=1 // loop_body
      %s22 = ssub.s32 %s17, 1
      %s23 = ssub.s32 %s17, 2
      %s24 = sadd.s32 %s17, 1
      %s25 = ssub.s32 %s17, %s24
      %p26 = scmp.eq.s32.totalorder %s25, 0
      %s28 = sadd.s32 %s27, 1
      %s29 = scalar_select %p26, %s27, %s28
      %p32 = pneg %p26
      %p33 = scmp.eq.s32.totalorder %s17, 1
      %p34 = por %p32, %p33
      %p35 = scmp.ne.s32.totalorder %s27, %s30
      %p36 = scmp.eq.s32.totalorder %s17, 0
      %p37 = por %p35, %p36
      %p38 = scmp.ne.s32.totalorder %s27, %s30
      %p39 = scmp.eq.s32.totalorder %s22, 1
      %p40 = por %p38, %p39
      %p41 = scmp.ne.s32.totalorder %s30, %s31
      %p42 = scmp.eq.s32.totalorder %s22, 0
      %p43 = por %p41, %p42
      %p44 = scmp.ne.s32.totalorder %s30, %s31
      %p45 = scmp.eq.s32.totalorder %s23, 1
      %p46 = por %p44, %p45
      %p48 = scmp.ne.s32.totalorder %s31, %s47
      %p49 = scmp.eq.s32.totalorder %s23, 0
      %p50 = por %p48, %p49
      %s52 = sadd.s32 %s51, 1
      %p55 = scmp.eq.s32.totalorder %s17, 1
      %p56 = scmp.ne.s32.totalorder %s51, %s53
      %p57 = scmp.eq.s32.totalorder %s17, 0
      %p58 = por %p56, %p57
      %p59 = scmp.ne.s32.totalorder %s51, %s53
      %p60 = scmp.eq.s32.totalorder %s22, 1
      %p61 = por %p59, %p60
      %p62 = scmp.ne.s32.totalorder %s53, %s54
      %p63 = scmp.eq.s32.totalorder %s22, 0
      %p64 = por %p62, %p63
      %p65 = scmp.ne.s32.totalorder %s53, %s54
      %p66 = scmp.eq.s32.totalorder %s23, 1
      %p67 = por %p65, %p66
      %p69 = scmp.ne.s32.totalorder %s54, %s68
      %p70 = scmp.eq.s32.totalorder %s23, 0
      %p71 = por %p69, %p70
      %s73 = sadd.s32 %s72, 1
      %p76 = scmp.eq.s32.totalorder %s17, 1
      %p77 = scmp.ne.s32.totalorder %s72, %s74
      %p78 = scmp.eq.s32.totalorder %s17, 0
      %p79 = por %p77, %p78
      %p80 = scmp.ne.s32.totalorder %s72, %s74
      %p81 = scmp.eq.s32.totalorder %s22, 1
      %p82 = por %p80, %p81
      %p83 = scmp.ne.s32.totalorder %s74, %s75
      %p84 = scmp.eq.s32.totalorder %s22, 0
      %p85 = por %p83, %p84
      %p86 = scmp.ne.s32.totalorder %s74, %s75
      %p87 = scmp.eq.s32.totalorder %s23, 1
      %p88 = por %p86, %p87
      %p90 = scmp.ne.s32.totalorder %s75, %s89
      %p91 = scmp.eq.s32.totalorder %s23, 0
      %p92 = por %p90, %p91
      %s94 = sadd.s32 %s93, 1
      %p97 = scmp.eq.s32.totalorder %s17, 1
      %p98 = scmp.ne.s32.totalorder %s93, %s95
      %p99 = scmp.eq.s32.totalorder %s17, 0
      %p100 = por %p98, %p99
      %p101 = scmp.ne.s32.totalorder %s93, %s95
      %p102 = scmp.eq.s32.totalorder %s22, 1
      %p103 = por %p101, %p102
      %p104 = scmp.ne.s32.totalorder %s95, %s96
      %p105 = scmp.eq.s32.totalorder %s22, 0
      %p106 = por %p104, %p105
      %p107 = scmp.ne.s32.totalorder %s95, %s96
      %p108 = scmp.eq.s32.totalorder %s23, 1
      %p109 = por %p107, %p108
      %p111 = scmp.ne.s32.totalorder %s96, %s110
      %p112 = scmp.eq.s32.totalorder %s23, 0
      %p113 = por %p111, %p112
      %s114 = ssub.s32 %s17, %s24
      %p115 = scmp.eq.s32.totalorder %s114, 0
      %s117 = sadd.s32 %s116, 1
      %s118 = scalar_select %p115, %s116, %s117
      %p121 = pneg %p115
      %p122 = scmp.eq.s32.totalorder %s17, 1
      %p123 = por %p121, %p122
      %p124 = scmp.ne.s32.totalorder %s116, %s119
      %p125 = scmp.eq.s32.totalorder %s17, 0
      %p126 = por %p124, %p125
      %p127 = scmp.ne.s32.totalorder %s116, %s119
      %p128 = scmp.eq.s32.totalorder %s22, 1
      %p129 = por %p127, %p128
      %p130 = scmp.ne.s32.totalorder %s119, %s120
      %p131 = scmp.eq.s32.totalorder %s22, 0
      %p132 = por %p130, %p131
      %p133 = scmp.ne.s32.totalorder %s119, %s120
      %p134 = scmp.eq.s32.totalorder %s23, 1
      %p135 = por %p133, %p134
      %p137 = scmp.ne.s32.totalorder %s120, %s136
      %p138 = scmp.eq.s32.totalorder %s23, 0
      %p139 = por %p137, %p138
      %p140 = scmp.le.s32.totalorder 1, %s17
      %p141 = scmp.lt.s32.totalorder %s17, 3
      %p142 = pnand %p140, %p141
      %p143 = pneg %p142
      // Predicated region
      $region9: #{tpu_custom_call.1} parent=5 // pred_check
        _
      $region10: #{tpu_custom_call.1} parent=5 // pred_check_branch
        %145 = sbr.rel (%p142) target = $region12
      $region11: #{tpu_custom_call.1} parent=5 // pred_region
        %s146 = ssub.s32 %s17, 1
        // Predicated region
        $region13: #{tpu_custom_call.1} parent=11 // pred_check
          %p147 = pneg %p64
        $region14: #{tpu_custom_call.1} parent=11 // pred_check_branch
          %149 = sbr.rel (%p147) target = $region16
        $region15: #{tpu_custom_call.1} parent=11 // pred_region
          %s151 = ssub.s32 1024, 1024
          %152 = vsyncadd [#allocation6], %s151
          %s153 = sshll.u32 [#allocation5], 4
          %s154 = int_to_ptr.vmem [resolvable:$true] %s153
          %159 = dma.hbm_to_vmem [thread:$0]  %s1, 1024, %s154, [#allocation6], 128, 128, 8
        $region16: #{tpu_custom_call.1} parent=11 // pred_fallthru
          _
        // Predicated region
        $region17: #{tpu_custom_call.1} parent=11 // pred_check
          %p160 = pneg %p85
        $region18: #{tpu_custom_call.1} parent=11 // pred_check_branch
          %162 = sbr.rel (%p160) target = $region20
        $region19: #{tpu_custom_call.1} parent=11 // pred_region
          %s164 = ssub.s32 512, 512
          %165 = vsyncadd [#allocation6], %s164
          %s166 = sshll.u32 [#allocation7], 4
          %s167 = int_to_ptr.vmem [resolvable:$true] %s166
          %172 = dma.hbm_to_vmem [thread:$0]  %s2, 512, %s167, [#allocation6], 64, 64, 4
        $region20: #{tpu_custom_call.1} parent=11 // pred_fallthru
          _
        // Predicated region
        $region21: #{tpu_custom_call.1} parent=11 // pred_check
          %p173 = pneg %p106
        $region22: #{tpu_custom_call.1} parent=11 // pred_check_branch
          %175 = sbr.rel (%p173) target = $region24
        $region23: #{tpu_custom_call.1} parent=11 // pred_region
          _
        $region24: #{tpu_custom_call.1} parent=11 // pred_fallthru
          _
      $region12: #{tpu_custom_call.1} parent=5 // pred_fallthru
        _
      %p176 = scmp.lt.s32.totalorder %s17, 2
      // Predicated region
      $region25: #{tpu_custom_call.1} parent=5 // pred_check
        %p177 = pneg %p176
      $region26: #{tpu_custom_call.1} parent=5 // pred_check_branch
        %179 = sbr.rel (%p177) target = $region28
      $region27: #{tpu_custom_call.1} parent=5 // pred_region
        // Predicated region
        $region29: #{tpu_custom_call.1} parent=27 // pred_check
          %p180 = pneg %p37
        $region30: #{tpu_custom_call.1} parent=27 // pred_check_branch
          %182 = sbr.rel (%p180) target = $region32
        $region31: #{tpu_custom_call.1} parent=27 // pred_region
          %s183 = sand.u32 %s27, 1
          %s184 = scalar_lea.sflag [#allocation3], %s183
          %s185 = sand.u32 %s27, 1
          %s186 = smul.addr %s185, 4
          %s187 = scalar_lea.vmem [#allocation2], %s186
          %s189 = ssub.s32 64, 64
          %190 = vsyncadd %s184, %s189
          %s191 = smul.addr %s17, 64
          %s192 = scalar_lea.hbm %s0, %s191
          %s194 = sshll.u32 %s187, 4
          %s195 = int_to_ptr.vmem [resolvable:$true] %s194
          %197 = dma.hbm_to_vmem [thread:$0]  %s192, 64, %s195, %s184
        $region32: #{tpu_custom_call.1} parent=27 // pred_fallthru
          _
      $region28: #{tpu_custom_call.1} parent=5 // pred_fallthru
        _
      %p198 = scmp.le.s32.totalorder 1, %s17
      %p199 = scmp.lt.s32.totalorder %s17, 3
      %p200 = pnand %p198, %p199
      %p201 = pneg %p200
      // Predicated region
      $region33: #{tpu_custom_call.1} parent=5 // pred_check
        _
      $region34: #{tpu_custom_call.1} parent=5 // pred_check_branch
        %203 = sbr.rel (%p200) target = $region36
      $region35: #{tpu_custom_call.1} parent=5 // pred_region
        %s204 = ssub.s32 %s17, 1
        %s205 = sand.u32 %s30, 1
        %s206 = scalar_lea.sflag [#allocation3], %s205
        %s207 = sand.u32 %s30, 1
        %s208 = smul.addr %s207, 4
        %s209 = scalar_lea.vmem [#allocation2], %s208
        // Predicated region
        $region37: #{tpu_custom_call.1} parent=35 // pred_check
          %p210 = pneg %p43
        $region38: #{tpu_custom_call.1} parent=35 // pred_check_branch
          %212 = sbr.rel (%p210) target = $region40
        $region39: #{tpu_custom_call.1} parent=35 // pred_region
          %213 = dma.done %s206, 64
        $region40: #{tpu_custom_call.1} parent=35 // pred_fallthru
          _
        // Predicated region
        $region41: #{tpu_custom_call.1} parent=35 // pred_check
          %p214 = pneg %p64
        $region42: #{tpu_custom_call.1} parent=35 // pred_check_branch
          %216 = sbr.rel (%p214) target = $region44
        $region43: #{tpu_custom_call.1} parent=35 // pred_region
          %217 = dma.done [#allocation6], 1024
        $region44: #{tpu_custom_call.1} parent=35 // pred_fallthru
          _
        // Predicated region
        $region45: #{tpu_custom_call.1} parent=35 // pred_check
          %p218 = pneg %p85
        $region46: #{tpu_custom_call.1} parent=35 // pred_check_branch
          %220 = sbr.rel (%p218) target = $region48
        $region47: #{tpu_custom_call.1} parent=35 // pred_region
          %221 = dma.done [#allocation6], 512
        $region48: #{tpu_custom_call.1} parent=35 // pred_fallthru
          _
        %s222 = sand.u32 %s30, 1
        %s223 = scalar_lea.sflag [#allocation3], %s222
        %s224 = sand.u32 %s30, 1
        %s225 = smul.addr %s224, 4
        %s226 = scalar_lea.vmem [#allocation2], %s225
        %p227 = pneg %p43
        %p228 = pneg %p40
        %p229 = pneg %p64
        %p230 = pneg %p61
        %p231 = pneg %p85
        %p232 = pneg %p82
        %p233 = pneg %p106
        %p234 = pneg %p103
        %p235 = pneg %p132
        %p236 = pneg %p129
        %s237 = sand.u32 %s119, 1
        %s238 = scalar_lea.sflag [#allocation4], %s237
        %s239 = sand.u32 %s119, 1
        %s240 = smul.addr %s239, 8
        %s241 = scalar_lea.vmem [#allocation8], %s240
        %v243 = vld [vmem:[%s209] sm:$0xf]
        %v244 = vld [vmem:[#allocation5] sm:$0xff]
        %v245 = vld [vmem:[#allocation5 + $0x8] sm:$0xff]
        %v246 = vld [vmem:[#allocation5 + $0x10] sm:$0xff]
        %v247 = vld [vmem:[#allocation5 + $0x18] sm:$0xff]
        %v248 = vld [vmem:[#allocation5 + $0x20] sm:$0xff]
        %v249 = vld [vmem:[#allocation5 + $0x28] sm:$0xff]
        %v250 = vld [vmem:[#allocation5 + $0x30] sm:$0xff]
        %v251 = vld [vmem:[#allocation5 + $0x38] sm:$0xff]
        %v260 = vunpack.c.l.b16 %v244
        %v261 = vunpack.c.h.b16 %v244
        %v262 = vunpack.c.l.b16 %v245
        %v263 = vunpack.c.h.b16 %v245
        %v264 = vunpack.c.l.b16 %v246
        %v265 = vunpack.c.h.b16 %v246
        %v266 = vunpack.c.l.b16 %v247
        %v267 = vunpack.c.h.b16 %v247
        %v268 = vunpack.c.l.b16 %v248
        %v269 = vunpack.c.h.b16 %v248
        %v270 = vunpack.c.l.b16 %v249
        %v271 = vunpack.c.h.b16 %v249
        %v272 = vunpack.c.l.b16 %v250
        %v273 = vunpack.c.h.b16 %v250
        %v274 = vunpack.c.l.b16 %v251
        %v275 = vunpack.c.h.b16 %v251
        %v276 = vpack.c.b16 %v262, %v260
        %v277 = vpack.c.b16 %v263, %v261
        %v278 = vpack.c.b16 %v266, %v264
        %v279 = vpack.c.b16 %v267, %v265
        %v280 = vpack.c.b16 %v270, %v268
        %v281 = vpack.c.b16 %v271, %v269
        %v282 = vpack.c.b16 %v274, %v272
        %v283 = vpack.c.b16 %v275, %v273
        %vm292 = vcmask 523264
        %v294 = vsel %vm292, %v243, 0
        %296 = vmatprep.subr.bf16.mxu0 %v277
        %297 = vmatpush1.bf16.msra.mxu0 %v276
        %298 = vmatprep.subr.bf16.mxu0 %v279
        %299 = vmatpush1.bf16.msra.mxu0 %v278
        %300 = vmatprep.subr.bf16.mxu0 %v281
        %301 = vmatpush1.bf16.msra.mxu0 %v280
        %302 = vmatprep.subr.bf16.mxu0 %v283
        %303 = vmatpush1.bf16.msra.mxu0 %v282
        %304 = vmatprep.subr.bf16.mxu0 0
        %305 = vmatpush1.bf16.msra.mxu0 0
        %306 = vmatprep.subr.bf16.mxu0 0
        %307 = vmatpush1.bf16.msra.mxu0 0
        %308 = vmatprep.subr.bf16.mxu0 0
        %309 = vmatpush1.bf16.msra.mxu0 0
        %310 = vmatprep.subr.bf16.mxu0 0
        %311 = vmatpush1.bf16.msra.mxu0 0
        %312 = vmatprep.subr.bf16.mxu0 0
        %313 = vmatpush1.bf16.msra.mxu0 0
        %314 = vmatprep.subr.bf16.mxu0 0
        %315 = vmatpush1.bf16.msra.mxu0 0
        %316 = vmatprep.subr.bf16.mxu0 0
        %317 = vmatpush1.bf16.msra.mxu0 0
        %318 = vmatprep.subr.bf16.mxu0 0
        %319 = vmatpush1.bf16.msra.mxu0 0
        %320 = vmatprep.subr.bf16.mxu0 0
        %321 = vmatpush1.bf16.msra.mxu0 0
        %322 = vmatprep.subr.bf16.mxu0 0
        %323 = vmatpush1.bf16.msra.mxu0 0
        %324 = vmatprep.subr.bf16.mxu0 0
        %325 = vmatpush1.bf16.msra.mxu0 0
        %326 = vmatprep.subr.bf16.mxu0 0
        %327 = vmatpush1.bf16.msra.mxu0 0
        %328 = vmatprep.mubr.bf16.mxu0 0
        %329 = vmatmul.mubr.bf16.gmra.mrb[0].mxu0 %v294
        %v330 = vpop.f32.mrb[0].mxu0
        %v331 = vadd.f32 0.0, %v330
        %v332 = vpop.f32.mrb[0].mxu0
        %v333 = vadd.f32 0.0, %v332
        %v334 = vpop.f32.mrb[0].mxu0
        %v335 = vpop.f32.mrb[0].mxu0
        %336 = vdwg.mxu0
        %v337 = vpack.c.bf16 %v331, %v331
        %v338 = vpack.c.bf16 %v333, %v333
        %v339 = vlaneseq
        %v340 = vshrl.u32 %v339, 7
        %v341 = vlaneseq
        %v342 = vand.u32 %v341, 127
        %vm343 = vcmp.le.s32.totalorder %v342, %v340
        %345 = vrot.lane.b32.xlu0 %v337, 64
        %v346 = vpop.permute.xlu0 %345
        %vm347 = vcmask 130048
        %v349 = vsel %vm347, %v337, 0
        %v352 = vsel %vm347, %v346, 0
        %354 = vmatprep.subr.bf16.mxu0 0
        %355 = vmatpush1.bf16.xpose.msra.mxu0 %v352
        %356 = vmatprep.subr.bf16.mxu0 0
        %357 = vmatpush1.bf16.xpose.msra.mxu0 0
        %358 = vmatprep.subr.bf16.mxu0 0
        %359 = vmatpush1.bf16.xpose.msra.mxu0 0
        %360 = vmatprep.subr.bf16.mxu0 0
        %361 = vmatpush1.bf16.xpose.msra.mxu0 0
        %362 = vmatprep.subr.bf16.mxu0 0
        %363 = vmatpush1.bf16.xpose.msra.mxu0 0
        %364 = vmatprep.subr.bf16.mxu0 0
        %365 = vmatpush1.bf16.xpose.msra.mxu0 0
        %366 = vmatprep.subr.bf16.mxu0 0
        %367 = vmatpush1.bf16.xpose.msra.mxu0 0
        %368 = vmatprep.subr.bf16.mxu0 0
        %369 = vmatpush1.bf16.xpose.msra.mxu0 0
        %370 = vmatprep.subr.bf16.mxu0 0
        %371 = vmatpush1.bf16.xpose.msra.mxu0 0
        %372 = vmatprep.subr.bf16.mxu0 0
        %373 = vmatpush1.bf16.xpose.msra.mxu0 0
        %374 = vmatprep.subr.bf16.mxu0 0
        %375 = vmatpush1.bf16.xpose.msra.mxu0 0
        %376 = vmatprep.subr.bf16.mxu0 0
        %377 = vmatpush1.bf16.xpose.msra.mxu0 0
        %378 = vmatprep.subr.bf16.mxu0 0
        %379 = vmatpush1.bf16.xpose.msra.mxu0 0
        %380 = vmatprep.subr.bf16.mxu0 0
        %381 = vmatpush1.bf16.xpose.msra.mxu0 0
        %382 = vmatprep.subr.bf16.mxu0 0
        %383 = vmatpush1.bf16.xpose.msra.mxu0 0
        %384 = vmatprep.subr.bf16.mxu0 0
        %385 = vmatpush1.bf16.xpose.msra.mxu0 0
        %386 = vmatprep.mubr.bf16.mxu0 0
        %387 = vmatmul.mubr.bf16.gmra.mrb[0].mxu0 %v349
        %v388 = vpop.f32.mrb[0].mxu0
        %v389 = vadd.f32 0.0, %v388
        %v390 = vpop.f32.mrb[0].mxu0
        %v391 = vpop.f32.mrb[0].mxu0
        %v392 = vpop.f32.mrb[0].mxu0
        %393 = vdwg.mxu0
        %v394 = vsel %vm343, %v389, -1e+30
        %vm395 = vcmask 64512
        %v396 = vsel %vm395, %v394, -inf
        %397 = vmax.xlane.f32.xlu0 %v396
        %v398 = vpop.xlane.xlu0 %397
        %v399 = vsub.f32 %v394, %v398
        %v400 = vmul.f32 %v399, 1.442695
        %v401 = vpow.pop %v400
        %v402 = vsel %vm395, %v401, 0.0
        %403 = vadd.xlane.f32.xlu0 %v402
        %v404 = vpop.xlane.xlu0 %403
        %v405 = vrcp.pop %v404
        %v406 = vmul.f32 %v401, %v405
        %v407 = vpack.c.bf16 %v406, %v406
        %v409 = vsel %vm395, %v407, 0
        %vm411 = vcmask 1043456
        %v413 = vsel %vm411, %v338, 0
        %415 = vmatprep.subr.bf16.mxu0 0
        %416 = vmatpush1.bf16.msra.mxu0 %v413
        %417 = vmatprep.subr.bf16.mxu0 0
        %418 = vmatpush1.bf16.msra.mxu0 0
        %419 = vmatprep.subr.bf16.mxu0 0
        %420 = vmatpush1.bf16.msra.mxu0 0
        %421 = vmatprep.subr.bf16.mxu0 0
        %422 = vmatpush1.bf16.msra.mxu0 0
        %423 = vmatprep.subr.bf16.mxu0 0
        %424 = vmatpush1.bf16.msra.mxu0 0
        %425 = vmatprep.subr.bf16.mxu0 0
        %426 = vmatpush1.bf16.msra.mxu0 0
        %427 = vmatprep.subr.bf16.mxu0 0
        %428 = vmatpush1.bf16.msra.mxu0 0
        %429 = vmatprep.subr.bf16.mxu0 0
        %430 = vmatpush1.bf16.msra.mxu0 0
        %431 = vmatprep.subr.bf16.mxu0 0
        %432 = vmatpush1.bf16.msra.mxu0 0
        %433 = vmatprep.subr.bf16.mxu0 0
        %434 = vmatpush1.bf16.msra.mxu0 0
        %435 = vmatprep.subr.bf16.mxu0 0
        %436 = vmatpush1.bf16.msra.mxu0 0
        %437 = vmatprep.subr.bf16.mxu0 0
        %438 = vmatpush1.bf16.msra.mxu0 0
        %439 = vmatprep.subr.bf16.mxu0 0
        %440 = vmatpush1.bf16.msra.mxu0 0
        %441 = vmatprep.subr.bf16.mxu0 0
        %442 = vmatpush1.bf16.msra.mxu0 0
        %443 = vmatprep.subr.bf16.mxu0 0
        %444 = vmatpush1.bf16.msra.mxu0 0
        %445 = vmatprep.subr.bf16.mxu0 0
        %446 = vmatpush1.bf16.msra.mxu0 0
        %447 = vmatprep.mubr.bf16.mxu0 0
        %448 = vmatmul.mubr.bf16.gmra.mrb[0].mxu0 %v409
        %v449 = vpop.f32.mrb[0].mxu0
        %v450 = vadd.f32 0.0, %v449
        %v451 = vpop.f32.mrb[0].mxu0
        %v452 = vpop.f32.mrb[0].mxu0
        %v453 = vpop.f32.mrb[0].mxu0
        %454 = vdwg.mxu0
        %v455 = vpack.c.bf16 %v450, %v450
        %456 = vrot.lane.b32.xlu0 %v337, 112
        %v457 = vpop.permute.xlu0 %456
        %458 = vrot.lane.b32.xlu0 %v337, 48
        %v459 = vpop.permute.xlu0 %458
        %v461 = vsel %vm347, %v457, 0
        %v464 = vsel %vm347, %v459, 0
        %466 = vmatprep.subr.bf16.mxu0 0
        %467 = vmatpush1.bf16.xpose.msra.mxu0 %v464
        %468 = vmatprep.subr.bf16.mxu0 0
        %469 = vmatpush1.bf16.xpose.msra.mxu0 0
        %470 = vmatprep.subr.bf16.mxu0 0
        %471 = vmatpush1.bf16.xpose.msra.mxu0 0
        %472 = vmatprep.subr.bf16.mxu0 0
        %473 = vmatpush1.bf16.xpose.msra.mxu0 0
        %474 = vmatprep.subr.bf16.mxu0 0
        %475 = vmatpush1.bf16.xpose.msra.mxu0 0
        %476 = vmatprep.subr.bf16.mxu0 0
        %477 = vmatpush1.bf16.xpose.msra.mxu0 0
        %478 = vmatprep.subr.bf16.mxu0 0
        %479 = vmatpush1.bf16.xpose.msra.mxu0 0
        %480 = vmatprep.subr.bf16.mxu0 0
        %481 = vmatpush1.bf16.xpose.msra.mxu0 0
        %482 = vmatprep.subr.bf16.mxu0 0
        %483 = vmatpush1.bf16.xpose.msra.mxu0 0
        %484 = vmatprep.subr.bf16.mxu0 0
        %485 = vmatpush1.bf16.xpose.msra.mxu0 0
        %486 = vmatprep.subr.bf16.mxu0 0
        %487 = vmatpush1.bf16.xpose.msra.mxu0 0
        %488 = vmatprep.subr.bf16.mxu0 0
        %489 = vmatpush1.bf16.xpose.msra.mxu0 0
        %490 = vmatprep.subr.bf16.mxu0 0
        %491 = vmatpush1.bf16.xpose.msra.mxu0 0
        %492 = vmatprep.subr.bf16.mxu0 0
        %493 = vmatpush1.bf16.xpose.msra.mxu0 0
        %494 = vmatprep.subr.bf16.mxu0 0
        %495 = vmatpush1.bf16.xpose.msra.mxu0 0
        %496 = vmatprep.subr.bf16.mxu0 0
        %497 = vmatpush1.bf16.xpose.msra.mxu0 0
        %498 = vmatprep.mubr.bf16.mxu0 0
        %499 = vmatmul.mubr.bf16.gmra.mrb[0].mxu0 %v461
        %v500 = vpop.f32.mrb[0].mxu0
        %v501 = vadd.f32 0.0, %v500
        %v502 = vpop.f32.mrb[0].mxu0
        %v503 = vpop.f32.mrb[0].mxu0
        %v504 = vpop.f32.mrb[0].mxu0
        %505 = vdwg.mxu0
        %v506 = vsel %vm343, %v501, -1e+30
        %v507 = vsel %vm395, %v506, -inf
        %508 = vmax.xlane.f32.xlu0 %v507
        %v509 = vpop.xlane.xlu0 %508
        %v510 = vsub.f32 %v506, %v509
        %v511 = vmul.f32 %v510, 1.442695
        %v512 = vpow.pop %v511
        %v513 = vsel %vm395, %v512, 0.0
        %514 = vadd.xlane.f32.xlu0 %v513
        %v515 = vpop.xlane.xlu0 %514
        %v516 = vrcp.pop %v515
        %v517 = vmul.f32 %v512, %v516
        %v518 = vpack.c.bf16 %v517, %v517
        %520 = vrot.lane.b32.xlu0 %v338, 112
        %v521 = vpop.permute.xlu0 %520
        %v523 = vsel %vm395, %v518, 0
        %v526 = vsel %vm411, %v521, 0
        %528 = vmatprep.subr.bf16.mxu0 0
        %529 = vmatpush1.bf16.msra.mxu0 %v526
        %530 = vmatprep.subr.bf16.mxu0 0
        %531 = vmatpush1.bf16.msra.mxu0 0
        %532 = vmatprep.subr.bf16.mxu0 0
        %533 = vmatpush1.bf16.msra.mxu0 0
        %534 = vmatprep.subr.bf16.mxu0 0
        %535 = vmatpush1.bf16.msra.mxu0 0
        %536 = vmatprep.subr.bf16.mxu0 0
        %537 = vmatpush1.bf16.msra.mxu0 0
        %538 = vmatprep.subr.bf16.mxu0 0
        %539 = vmatpush1.bf16.msra.mxu0 0
        %540 = vmatprep.subr.bf16.mxu0 0
        %541 = vmatpush1.bf16.msra.mxu0 0
        %542 = vmatprep.subr.bf16.mxu0 0
        %543 = vmatpush1.bf16.msra.mxu0 0
        %544 = vmatprep.subr.bf16.mxu0 0
        %545 = vmatpush1.bf16.msra.mxu0 0
        %546 = vmatprep.subr.bf16.mxu0 0
        %547 = vmatpush1.bf16.msra.mxu0 0
        %548 = vmatprep.subr.bf16.mxu0 0
        %549 = vmatpush1.bf16.msra.mxu0 0
        %550 = vmatprep.subr.bf16.mxu0 0
        %551 = vmatpush1.bf16.msra.mxu0 0
        %552 = vmatprep.subr.bf16.mxu0 0
        %553 = vmatpush1.bf16.msra.mxu0 0
        %554 = vmatprep.subr.bf16.mxu0 0
        %555 = vmatpush1.bf16.msra.mxu0 0
        %556 = vmatprep.subr.bf16.mxu0 0
        %557 = vmatpush1.bf16.msra.mxu0 0
        %558 = vmatprep.subr.bf16.mxu0 0
        %559 = vmatpush1.bf16.msra.mxu0 0
        %560 = vmatprep.mubr.bf16.mxu0 0
        %561 = vmatmul.mubr.bf16.gmra.mrb[0].mxu0 %v523
        %v562 = vpop.f32.mrb[0].mxu0
        %v563 = vadd.f32 0.0, %v562
        %v564 = vpop.f32.mrb[0].mxu0
        %v565 = vpop.f32.mrb[0].mxu0
        %v566 = vpop.f32.mrb[0].mxu0
        %567 = vdwg.mxu0
        %v568 = vpack.c.bf16 %v563, %v563
        %569 = vrot.lane.b32.xlu0 %v337, 96
        %v570 = vpop.permute.xlu0 %569
        %571 = vrot.lane.b32.xlu0 %v337, 32
        %v572 = vpop.permute.xlu0 %571
        %v574 = vsel %vm347, %v570, 0
        %v577 = vsel %vm347, %v572, 0
        %579 = vmatprep.subr.bf16.mxu0 0
        %580 = vmatpush1.bf16.xpose.msra.mxu0 %v577
        %581 = vmatprep.subr.bf16.mxu0 0
        %582 = vmatpush1.bf16.xpose.msra.mxu0 0
        %583 = vmatprep.subr.bf16.mxu0 0
        %584 = vmatpush1.bf16.xpose.msra.mxu0 0
        %585 = vmatprep.subr.bf16.mxu0 0
        %586 = vmatpush1.bf16.xpose.msra.mxu0 0
        %587 = vmatprep.subr.bf16.mxu0 0
        %588 = vmatpush1.bf16.xpose.msra.mxu0 0
        %589 = vmatprep.subr.bf16.mxu0 0
        %590 = vmatpush1.bf16.xpose.msra.mxu0 0
        %591 = vmatprep.subr.bf16.mxu0 0
        %592 = vmatpush1.bf16.xpose.msra.mxu0 0
        %593 = vmatprep.subr.bf16.mxu0 0
        %594 = vmatpush1.bf16.xpose.msra.mxu0 0
        %595 = vmatprep.subr.bf16.mxu0 0
        %596 = vmatpush1.bf16.xpose.msra.mxu0 0
        %597 = vmatprep.subr.bf16.mxu0 0
        %598 = vmatpush1.bf16.xpose.msra.mxu0 0
        %599 = vmatprep.subr.bf16.mxu0 0
        %600 = vmatpush1.bf16.xpose.msra.mxu0 0
        %601 = vmatprep.subr.bf16.mxu0 0
        %602 = vmatpush1.bf16.xpose.msra.mxu0 0
        %603 = vmatprep.subr.bf16.mxu0 0
        %604 = vmatpush1.bf16.xpose.msra.mxu0 0
        %605 = vmatprep.subr.bf16.mxu0 0
        %606 = vmatpush1.bf16.xpose.msra.mxu0 0
        %607 = vmatprep.subr.bf16.mxu0 0
        %608 = vmatpush1.bf16.xpose.msra.mxu0 0
        %609 = vmatprep.subr.bf16.mxu0 0
        %610 = vmatpush1.bf16.xpose.msra.mxu0 0
        %611 = vmatprep.mubr.bf16.mxu0 0
        %612 = vmatmul.mubr.bf16.gmra.mrb[0].mxu0 %v574
        %v613 = vpop.f32.mrb[0].mxu0
        %v614 = vadd.f32 0.0, %v613
        %v615 = vpop.f32.mrb[0].mxu0
        %v616 = vpop.f32.mrb[0].mxu0
        %v617 = vpop.f32.mrb[0].mxu0
        %618 = vdwg.mxu0
        %v619 = vsel %vm343, %v614, -1e+30
        %v620 = vsel %vm395, %v619, -inf
        %621 = vmax.xlane.f32.xlu0 %v620
        %v622 = vpop.xlane.xlu0 %621
        %v623 = vsub.f32 %v619, %v622
        %v624 = vmul.f32 %v623, 1.442695
        %v625 = vpow.pop %v624
        %v626 = vsel %vm395, %v625, 0.0
        %627 = vadd.xlane.f32.xlu0 %v626
        %v628 = vpop.xlane.xlu0 %627
        %v629 = vrcp.pop %v628
        %v630 = vmul.f32 %v625, %v629
        %v631 = vpack.c.bf16 %v630, %v630
        %632 = vrot.lane.b32.xlu0 %v338, 96
        %v633 = vpop.permute.xlu0 %632
        %v635 = vsel %vm395, %v631, 0
        %v638 = vsel %vm411, %v633, 0
        %640 = vmatprep.subr.bf16.mxu0 0
        %641 = vmatpush1.bf16.msra.mxu0 %v638
        %642 = vmatprep.subr.bf16.mxu0 0
        %643 = vmatpush1.bf16.msra.mxu0 0
        %644 = vmatprep.subr.bf16.mxu0 0
        %645 = vmatpush1.bf16.msra.mxu0 0
        %646 = vmatprep.subr.bf16.mxu0 0
        %647 = vmatpush1.bf16.msra.mxu0 0
        %648 = vmatprep.subr.bf16.mxu0 0
        %649 = vmatpush1.bf16.msra.mxu0 0
        %650 = vmatprep.subr.bf16.mxu0 0
        %651 = vmatpush1.bf16.msra.mxu0 0
        %652 = vmatprep.subr.bf16.mxu0 0
        %653 = vmatpush1.bf16.msra.mxu0 0
        %654 = vmatprep.subr.bf16.mxu0 0
        %655 = vmatpush1.bf16.msra.mxu0 0
        %656 = vmatprep.subr.bf16.mxu0 0
        %657 = vmatpush1.bf16.msra.mxu0 0
        %658 = vmatprep.subr.bf16.mxu0 0
        %659 = vmatpush1.bf16.msra.mxu0 0
        %660 = vmatprep.subr.bf16.mxu0 0
        %661 = vmatpush1.bf16.msra.mxu0 0
        %662 = vmatprep.subr.bf16.mxu0 0
        %663 = vmatpush1.bf16.msra.mxu0 0
        %664 = vmatprep.subr.bf16.mxu0 0
        %665 = vmatpush1.bf16.msra.mxu0 0
        %666 = vmatprep.subr.bf16.mxu0 0
        %667 = vmatpush1.bf16.msra.mxu0 0
        %668 = vmatprep.subr.bf16.mxu0 0
        %669 = vmatpush1.bf16.msra.mxu0 0
        %670 = vmatprep.subr.bf16.mxu0 0
        %671 = vmatpush1.bf16.msra.mxu0 0
        %672 = vmatprep.mubr.bf16.mxu0 0
        %673 = vmatmul.mubr.bf16.gmra.mrb[0].mxu0 %v635
        %v674 = vpop.f32.mrb[0].mxu0
        %v675 = vadd.f32 0.0, %v674
        %v676 = vpop.f32.mrb[0].mxu0
        %v677 = vpop.f32.mrb[0].mxu0
        %v678 = vpop.f32.mrb[0].mxu0
        %679 = vdwg.mxu0
        %v680 = vpack.c.bf16 %v675, %v675
        %681 = vrot.lane.b32.xlu0 %v337, 80
        %v682 = vpop.permute.xlu0 %681
        %683 = vrot.lane.b32.xlu0 %v337, 16
        %v684 = vpop.permute.xlu0 %683
        %v686 = vsel %vm347, %v682, 0
        %v689 = vsel %vm347, %v684, 0
        %691 = vmatprep.subr.bf16.mxu0 0
        %692 = vmatpush1.bf16.xpose.msra.mxu0 %v689
        %693 = vmatprep.subr.bf16.mxu0 0
        %694 = vmatpush1.bf16.xpose.msra.mxu0 0
        %695 = vmatprep.subr.bf16.mxu0 0
        %696 = vmatpush1.bf16.xpose.msra.mxu0 0
        %697 = vmatprep.subr.bf16.mxu0 0
        %698 = vmatpush1.bf16.xpose.msra.mxu0 0
        %699 = vmatprep.subr.bf16.mxu0 0
        %700 = vmatpush1.bf16.xpose.msra.mxu0 0
        %701 = vmatprep.subr.bf16.mxu0 0
        %702 = vmatpush1.bf16.xpose.msra.mxu0 0
        %703 = vmatprep.subr.bf16.mxu0 0
        %704 = vmatpush1.bf16.xpose.msra.mxu0 0
        %705 = vmatprep.subr.bf16.mxu0 0
        %706 = vmatpush1.bf16.xpose.msra.mxu0 0
        %707 = vmatprep.subr.bf16.mxu0 0
        %708 = vmatpush1.bf16.xpose.msra.mxu0 0
        %709 = vmatprep.subr.bf16.mxu0 0
        %710 = vmatpush1.bf16.xpose.msra.mxu0 0
        %711 = vmatprep.subr.bf16.mxu0 0
        %712 = vmatpush1.bf16.xpose.msra.mxu0 0
        %713 = vmatprep.subr.bf16.mxu0 0
        %714 = vmatpush1.bf16.xpose.msra.mxu0 0
        %715 = vmatprep.subr.bf16.mxu0 0
        %716 = vmatpush1.bf16.xpose.msra.mxu0 0
        %717 = vmatprep.subr.bf16.mxu0 0
        %718 = vmatpush1.bf16.xpose.msra.mxu0 0
        %719 = vmatprep.subr.bf16.mxu0 0
        %720 = vmatpush1.bf16.xpose.msra.mxu0 0
        %721 = vmatprep.subr.bf16.mxu0 0
        %722 = vmatpush1.bf16.xpose.msra.mxu0 0
        %723 = vmatprep.mubr.bf16.mxu0 0
        %724 = vmatmul.mubr.bf16.gmra.mrb[0].mxu0 %v686
        %v725 = vpop.f32.mrb[0].mxu0
        %v726 = vadd.f32 0.0, %v725
        %v727 = vpop.f32.mrb[0].mxu0
        %v728 = vpop.f32.mrb[0].mxu0
        %v729 = vpop.f32.mrb[0].mxu0
        %730 = vdwg.mxu0
        %v731 = vsel %vm343, %v726, -1e+30
        %v732 = vsel %vm395, %v731, -inf
        %733 = vmax.xlane.f32.xlu0 %v732
        %v734 = vpop.xlane.xlu0 %733
        %v735 = vsub.f32 %v731, %v734
        %v736 = vmul.f32 %v735, 1.442695
        %v737 = vpow.pop %v736
        %v738 = vsel %vm395, %v737, 0.0
        %739 = vadd.xlane.f32.xlu0 %v738
        %v740 = vpop.xlane.xlu0 %739
        %v741 = vrcp.pop %v740
        %v742 = vmul.f32 %v737, %v741
        %v743 = vpack.c.bf16 %v742, %v742
        %744 = vrot.lane.b32.xlu0 %v338, 80
        %v745 = vpop.permute.xlu0 %744
        %v747 = vsel %vm395, %v743, 0
        %v750 = vsel %vm411, %v745, 0
        %752 = vmatprep.subr.bf16.mxu0 0
        %753 = vmatpush1.bf16.msra.mxu0 %v750
        %754 = vmatprep.subr.bf16.mxu0 0
        %755 = vmatpush1.bf16.msra.mxu0 0
        %756 = vmatprep.subr.bf16.mxu0 0
        %757 = vmatpush1.bf16.msra.mxu0 0
        %758 = vmatprep.subr.bf16.mxu0 0
        %759 = vmatpush1.bf16.msra.mxu0 0
        %760 = vmatprep.subr.bf16.mxu0 0
        %761 = vmatpush1.bf16.msra.mxu0 0
        %762 = vmatprep.subr.bf16.mxu0 0
        %763 = vmatpush1.bf16.msra.mxu0 0
        %764 = vmatprep.subr.bf16.mxu0 0
        %765 = vmatpush1.bf16.msra.mxu0 0
        %766 = vmatprep.subr.bf16.mxu0 0
        %767 = vmatpush1.bf16.msra.mxu0 0
        %768 = vmatprep.subr.bf16.mxu0 0
        %769 = vmatpush1.bf16.msra.mxu0 0
        %770 = vmatprep.subr.bf16.mxu0 0
        %771 = vmatpush1.bf16.msra.mxu0 0
        %772 = vmatprep.subr.bf16.mxu0 0
        %773 = vmatpush1.bf16.msra.mxu0 0
        %774 = vmatprep.subr.bf16.mxu0 0
        %775 = vmatpush1.bf16.msra.mxu0 0
        %776 = vmatprep.subr.bf16.mxu0 0
        %777 = vmatpush1.bf16.msra.mxu0 0
        %778 = vmatprep.subr.bf16.mxu0 0
        %779 = vmatpush1.bf16.msra.mxu0 0
        %780 = vmatprep.subr.bf16.mxu0 0
        %781 = vmatpush1.bf16.msra.mxu0 0
        %782 = vmatprep.subr.bf16.mxu0 0
        %783 = vmatpush1.bf16.msra.mxu0 0
        %784 = vmatprep.mubr.bf16.mxu0 0
        %785 = vmatmul.mubr.bf16.gmra.mrb[0].mxu0 %v747
        %v786 = vpop.f32.mrb[0].mxu0
        %v787 = vadd.f32 0.0, %v786
        %v788 = vpop.f32.mrb[0].mxu0
        %v789 = vpop.f32.mrb[0].mxu0
        %v790 = vpop.f32.mrb[0].mxu0
        %791 = vdwg.mxu0
        %v792 = vpack.c.bf16 %v787, %v787
        %794 = vrot.lane.b32.xlu0 %v568, 16
        %v795 = vpop.permute.xlu0 %794
        %797 = vrot.lane.b32.xlu0 %v680, 32
        %v798 = vpop.permute.xlu0 %797
        %800 = vrot.lane.b32.xlu0 %v792, 48
        %v801 = vpop.permute.xlu0 %800
        %v804 = vsel %vm347, %v455, %v795
        %vm805 = vcmask 261120
        %v807 = vsel %vm805, %v804, %v798
        %vm808 = vcmask 392192
        %v810 = vsel %vm808, %v807, %v801
        %v811 = vld [vmem:[#allocation7] sm:$0xf]
        %v812 = vld [vmem:[#allocation7 + $0x4] sm:$0xf]
        %v813 = vld [vmem:[#allocation7 + $0x8] sm:$0xf]
        %v814 = vld [vmem:[#allocation7 + $0xc] sm:$0xf]
        %v815 = vld [vmem:[#allocation7 + $0x10] sm:$0xf]
        %v816 = vld [vmem:[#allocation7 + $0x14] sm:$0xf]
        %v817 = vld [vmem:[#allocation7 + $0x18] sm:$0xf]
        %v818 = vld [vmem:[#allocation7 + $0x1c] sm:$0xf]
        %v819 = vld [vmem:[%s3] sm:$0x1]
        %v821 = vlaneseq
        %v822 = vshrl.u32 %v821, 7
        %v823 = vsub.s32 0, %v822
        %v824 = vrot.slane %v819, %v823
        %v834 = vunpack.c.l.b16 %v811
        %v835 = vunpack.c.l.b16 %v812
        %v836 = vunpack.c.l.b16 %v813
        %v837 = vunpack.c.l.b16 %v814
        %v838 = vunpack.c.l.b16 %v815
        %v839 = vunpack.c.l.b16 %v816
        %v840 = vunpack.c.l.b16 %v817
        %v841 = vunpack.c.l.b16 %v818
        %v842 = vpack.c.b16 %v835, %v834
        %v843 = vpack.c.b16 %v837, %v836
        %v844 = vpack.c.b16 %v839, %v838
        %v845 = vpack.c.b16 %v841, %v840
        %v850 = vsel %vm292, %v810, 0
        %852 = vmatprep.subr.bf16.mxu0 0
        %853 = vmatpush1.bf16.msra.mxu0 %v842
        %854 = vmatprep.subr.bf16.mxu0 0
        %855 = vmatpush1.bf16.msra.mxu0 %v843
        %856 = vmatprep.subr.bf16.mxu0 0
        %857 = vmatpush1.bf16.msra.mxu0 %v844
        %858 = vmatprep.subr.bf16.mxu0 0
        %859 = vmatpush1.bf16.msra.mxu0 %v845
        %860 = vmatprep.subr.bf16.mxu0 0
        %861 = vmatpush1.bf16.msra.mxu0 0
        %862 = vmatprep.subr.bf16.mxu0 0
        %863 = vmatpush1.bf16.msra.mxu0 0
        %864 = vmatprep.subr.bf16.mxu0 0
        %865 = vmatpush1.bf16.msra.mxu0 0
        %866 = vmatprep.subr.bf16.mxu0 0
        %867 = vmatpush1.bf16.msra.mxu0 0
        %868 = vmatprep.subr.bf16.mxu0 0
        %869 = vmatpush1.bf16.msra.mxu0 0
        %870 = vmatprep.subr.bf16.mxu0 0
        %871 = vmatpush1.bf16.msra.mxu0 0
        %872 = vmatprep.subr.bf16.mxu0 0
        %873 = vmatpush1.bf16.msra.mxu0 0
        %874 = vmatprep.subr.bf16.mxu0 0
        %875 = vmatpush1.bf16.msra.mxu0 0
        %876 = vmatprep.subr.bf16.mxu0 0
        %877 = vmatpush1.bf16.msra.mxu0 0
        %878 = vmatprep.subr.bf16.mxu0 0
        %879 = vmatpush1.bf16.msra.mxu0 0
        %880 = vmatprep.subr.bf16.mxu0 0
        %881 = vmatpush1.bf16.msra.mxu0 0
        %882 = vmatprep.subr.bf16.mxu0 0
        %883 = vmatpush1.bf16.msra.mxu0 0
        %884 = vmatprep.mubr.bf16.mxu0 0
        %885 = vmatmul.mubr.bf16.gmra.mrb[0].mxu0 %v850
        %v886 = vpop.f32.mrb[0].mxu0
        %v887 = vadd.f32 %v824, %v886
        %v888 = vpop.f32.mrb[0].mxu0
        %v889 = vpop.f32.mrb[0].mxu0
        %v890 = vpop.f32.mrb[0].mxu0
        %891 = vdwg.mxu0
        %892 = vst.msk [vmem:[%s241] sm:$0xff] %vm292, %v887
        %s893 = sand.u32 %s119, 1
        %s894 = scalar_lea.sflag [#allocation4], %s893
        %s895 = sand.u32 %s119, 1
        %s896 = smul.addr %s895, 8
        %s897 = scalar_lea.vmem [#allocation8], %s896
        // Predicated region
        $region49: #{tpu_custom_call.1} parent=35 // pred_check
          %p898 = pneg %p129
        $region50: #{tpu_custom_call.1} parent=35 // pred_check_branch
          %900 = sbr.rel (%p898) target = $region52
        $region51: #{tpu_custom_call.1} parent=35 // pred_region
          %s902 = ssub.s32 128, 128
          %903 = vsyncadd %s894, %s902
          %s904 = smul.addr %s22, 128
          %s905 = scalar_lea.hbm %s4, %s904
          %s907 = sshll.u32 %s897, 4
          %s908 = int_to_ptr.vmem [resolvable:$true] %s907
          %910 = dma.vmem_to_hbm [thread:$0]  %s908, 128, %s905, %s894
        $region52: #{tpu_custom_call.1} parent=35 // pred_fallthru
          _
      $region36: #{tpu_custom_call.1} parent=5 // pred_fallthru
        _
      %p911 = scmp.le.s32.totalorder 2, %s17
      // Predicated region
      $region53: #{tpu_custom_call.1} parent=5 // pred_check
        %p912 = pneg %p911
      $region54: #{tpu_custom_call.1} parent=5 // pred_check_branch
        %914 = sbr.rel (%p912) target = $region56
      $region55: #{tpu_custom_call.1} parent=5 // pred_region
        %s915 = ssub.s32 %s17, 2
        // Predicated region
        $region57: #{tpu_custom_call.1} parent=55 // pred_check
          %p916 = pneg %p135
        $region58: #{tpu_custom_call.1} parent=55 // pred_check_branch
          %918 = sbr.rel (%p916) target = $region60
        $region59: #{tpu_custom_call.1} parent=55 // pred_region
          %s919 = sand.u32 %s120, 1
          %s920 = scalar_lea.sflag [#allocation4], %s919
          %s921 = sand.u32 %s120, 1
          %s922 = smul.addr %s921, 8
          %s923 = scalar_lea.vmem [#allocation8], %s922
          %924 = dma.done %s920, 128
        $region60: #{tpu_custom_call.1} parent=55 // pred_fallthru
          _
      $region56: #{tpu_custom_call.1} parent=5 // pred_fallthru
        _
    $region6: #{tpu_custom_call.1} parent=1 // loop_footer
      %s21 = sadd.s32 1, %s17
    $region7: #{tpu_custom_call.1} parent=1 // loop_footer_branch
      %16 = sbr.rel target = $region3
    $region8: #{tpu_custom_call.1} parent=1 // loop_exit
      _
    %925 = vsyncpa [#allocation3], 1
    %s926 = scalar_lea.sflag [#allocation3], 1
    %927 = vsyncpa %s926, 1
    %928 = vsyncpa [#allocation6], 1
    %929 = vsyncpa [#allocation4], 1
    %s930 = scalar_lea.sflag [#allocation4], 1
    %931 = vsyncpa %s930, 1

</llo_original>
